<compile_context>
chip_gen: v7x
topology: tpu7x:2x2x1
jax: 0.10.0
libtpu: 0.0.40
codegen_flags: <defaults>
</compile_context>

<pallas_src>
import jax
import jax.numpy as jnp
from jax.experimental import pallas as pl
from jax.experimental.pallas import tpu as pltpu


def _round_up(a: int, b: int) -> int:
    return ((a + b - 1) // b) * b


def _vq_kernel(x_ref, cbt_ref, cb_ref, out_ref):
    # x_ref  : [TN, D]  tile of input rows
    # cbt_ref: [D, Kp]  codebook transposed, lane-padded (pad cols = col 0 copies)
    # cb_ref : [Kp, D]  codebook, row-padded  (pad rows = row 0 copies)
    x = x_ref[...]
    cbt = cbt_ref[...]
    cb = cb_ref[...]
    kp = cbt.shape[1]

    # No L2 normalization: argmax((x/||x||) @ cb.T) == argmax(x @ cb.T)
    # (positive-scale invariance; zero rows coincide at index 0).
    sims = jnp.dot(x, cbt, preferred_element_type=jnp.float32)      # [TN, Kp]

    # First-occurrence argmax over the (lane-full) codebook axis.
    idx = jnp.argmax(sims, axis=1, keepdims=True)                   # [TN, 1]

    # One-hot gather of codebook rows via matmul (TPU-friendly gather).
    # (1, Kp) iota broadcast in the compare — no [TN, Kp] iota materialization.
    lane_ids = jax.lax.broadcasted_iota(jnp.int32, (1, kp), 1)      # [1, Kp]
    onehot = (lane_ids == idx).astype(cb.dtype)                     # [TN, Kp]
    quantized = jnp.dot(onehot, cb, preferred_element_type=jnp.float32)

    out_ref[...] = quantized.astype(out_ref.dtype)


def prepare_codebook(codebook):
    """Pad the codebook lane axis to a multiple of 128 and pre-transpose.

    Pad rows are COPIES OF ROW 0: under first-max argmax a duplicate of row 0
    can never win over index 0, so padded lanes never change the result.
    Hoist this out of the per-call path when the codebook is static.
    """
    k, d = codebook.shape
    kp = _round_up(max(k, 128), 128)
    if kp != k:
        pad = jnp.broadcast_to(codebook[0:1], (kp - k, d))
        cb_pad = jnp.concatenate([codebook, pad], axis=0)           # [Kp, D]
    else:
        cb_pad = codebook
    cbt_pad = cb_pad.T                                              # [D, Kp]
    return cb_pad, cbt_pad


def vector_quantization(x, codebook, *, tile_n=8192, min_grid_steps=1,
                        vmem_budget_bytes=48 << 20, prepared=None):
    """x: [N, code_size], codebook: [codebook_size, code_size] -> [N, code_size].

    tile_n:         target rows per grid step (large default amortizes the
                    ~0.35 us per-step overhead; adaptively shrunk for VMEM).
    min_grid_steps: set to 2 on v7x so the parallel axis spans both TCs.
    prepared:       optional (cb_pad, cbt_pad) from prepare_codebook().
    """
    n, d = x.shape
    k, d2 = codebook.shape
    assert d == d2

    cb_pad, cbt_pad = prepared if prepared is not None else prepare_codebook(codebook)
    kp = cb_pad.shape[0]

    x_item = jnp.dtype(x.dtype).itemsize
    cb_item = jnp.dtype(codebook.dtype).itemsize

    # --- adaptive row tiling: bound padding waste to < 8 rows per step -------
    num_steps = max(min_grid_steps, pl.cdiv(n, tile_n))
    tile = max(8, _round_up(pl.cdiv(n, num_steps), 8))

    # Shrink the tile if the VMEM estimate blows the budget (keeps us inside
    # v5e's 16 MiB scoped default region and v7x's 64 MiB physical VMEM).
    def vmem_estimate(t):
        x_bytes = 2 * t * d * x_item                 # double-buffered input tile
        o_bytes = 2 * t * d * cb_item                # double-buffered output tile
        cb_bytes = 2 * 2 * kp * d * cb_item          # two codebook copies, 2-buffered
        interm = 3 * t * kp * 4                      # sims + one-hot + slack (f32)
        return x_bytes + o_bytes + cb_bytes + interm + (2 << 20)

    while vmem_estimate(tile) > vmem_budget_bytes and tile > 256:
        tile = max(8, _round_up(pl.cdiv(tile, 2), 8))

    n_pad = _round_up(n, tile)
    x_in = jnp.pad(x, ((0, n_pad - n), (0, 0))) if n_pad != n else x

    vmem_limit = int(min(max(vmem_estimate(tile), 16 << 20), 64 << 20))

    cost = pl.CostEstimate(
        flops=4 * n_pad * d * kp,                       # sims matmul + one-hot gather
        transcendentals=0,
        bytes_accessed=n_pad * d * (x_item + cb_item) + 2 * kp * d * cb_item,
    )

    out = pl.pallas_call(
        _vq_kernel,
        out_shape=jax.ShapeDtypeStruct((n_pad, d), codebook.dtype),
        grid_spec=pltpu.PrefetchScalarGridSpec(
            num_scalar_prefetch=0,
            grid=(n_pad // tile,),
            in_specs=[
                pl.BlockSpec((tile, d), lambda i: (i, 0)),   # x row tile
                pl.BlockSpec((d, kp), lambda i: (0, 0)),     # codebook^T (resident)
                pl.BlockSpec((kp, d), lambda i: (0, 0)),     # codebook   (resident)
            ],
            out_specs=pl.BlockSpec((tile, d), lambda i: (i, 0)),
        ),
        compiler_params=pltpu.CompilerParams(
            dimension_semantics=("parallel",),
            vmem_limit_bytes=vmem_limit,
        ),
        cost_estimate=cost,
    )(x_in, cbt_pad, cb_pad)

    return out[:n] if n_pad != n else out


def vq_reference(x, codebook):
    """Pure-JAX reference mirroring the PyTorch forward (with normalization)."""
    norm = jnp.sqrt(jnp.sum(x * x, axis=1, keepdims=True))
    emb = x / jnp.maximum(norm, 1e-12)
    sims = emb @ codebook.T
    idx = jnp.argmax(sims, axis=1)
    return codebook[idx]


if __name__ == "__main__":
    # Deterministic setup consistent with the module's __init__:
    #   code_size=32, codebook_size=64, code_std=0.01
    code_size = 32
    codebook_size = 64
    code_std = 0.01
    n = 16  # batch of embedding vectors

    key = jax.random.PRNGKey(0)
    kx, kc = jax.random.split(key)
    x = jax.random.normal(kx, (n, code_size), dtype=jnp.float32)
    codebook = code_std * jax.random.normal(kc, (codebook_size, code_size),
                                            dtype=jnp.float32)

    out = vector_quantization(x, codebook)
    out = jax.block_until_ready(out)

    ref = vq_reference(x, codebook)
    assert out.shape == (n, code_size)
    assert jnp.allclose(out, ref, atol=1e-5, rtol=1e-5), "mismatch vs reference"

    print("KERNEL_OK")
</pallas_src>

<mosaic_0001>
module attributes {stable_mosaic.version = 11 : i64} {
  func.func @_vq_kernel(%arg0: i32, %arg1: memref<16x32xf32, #tpu.memory_space<vmem>>, %arg2: memref<32x128xf32, #tpu.memory_space<vmem>>, %arg3: memref<128x32xf32, #tpu.memory_space<vmem>>, %arg4: memref<16x32xf32, #tpu.memory_space<vmem>>) attributes {dimension_semantics = [#tpu.dimension_semantics<parallel>], iteration_bounds = array<i64: 1>, scalar_prefetch = 0 : i64, scratch_operands = 0 : i64, tpu.core_type = #tpu.core_type<tc>, window_params = [{transform_indices = @transform_0, window_bounds = array<i64: 16, 32>}, {pipeline_mode = #tpu.pipeline_mode<synchronous>, transform_indices = @transform_1, window_bounds = array<i64: 32, 128>}, {pipeline_mode = #tpu.pipeline_mode<synchronous>, transform_indices = @transform_2, window_bounds = array<i64: 128, 32>}, {transform_indices = @transform_3, window_bounds = array<i64: 16, 32>}]} {
    %c0 = arith.constant 0 : index
    %c0_0 = arith.constant 0 : index
    %0 = vector.load %arg1[%c0, %c0_0] : memref<16x32xf32, #tpu.memory_space<vmem>>, vector<16x32xf32>
    %c0_1 = arith.constant 0 : index
    %c0_2 = arith.constant 0 : index
    %1 = vector.load %arg2[%c0_1, %c0_2] : memref<32x128xf32, #tpu.memory_space<vmem>>, vector<32x128xf32>
    %c0_3 = arith.constant 0 : index
    %c0_4 = arith.constant 0 : index
    %2 = vector.load %arg3[%c0_3, %c0_4] : memref<128x32xf32, #tpu.memory_space<vmem>>, vector<128x32xf32>
    %cst = arith.constant dense<0.000000e+00> : vector<16x128xf32>
    %3 = tpu.matmul %0, %1, %cst {dimension_numbers = #tpu.dot_dimension_numbers<[1], [0], [0], [1], [0, 0, 1, 1], [], []>} : vector<16x32xf32>, vector<32x128xf32>, vector<16x128xf32> -> vector<16x128xf32>
    %4 = tpu.reduce_index %3 {axis = 1 : i32, kind = #tpu.reduction_kind<arg_max>} : vector<16x128xf32> -> vector<16xi32>
    %5 = vector.shape_cast %4 : vector<16xi32> to vector<16x1xi32>
    %6 = tpu.iota {dimensions = array<i32: 1>} : vector<1x128xi32>
    %7 = vector.broadcast %6 : vector<1x128xi32> to vector<16x128xi32>
    %8 = vector.broadcast %5 : vector<16x1xi32> to vector<16x128xi32>
    %9 = arith.cmpi eq, %7, %8 : vector<16x128xi32>
    %10 = arith.extui %9 : vector<16x128xi1> to vector<16x128xi32>
    %11 = arith.sitofp %10 : vector<16x128xi32> to vector<16x128xf32>
    %cst_5 = arith.constant dense<0.000000e+00> : vector<16x32xf32>
    %12 = tpu.matmul %11, %2, %cst_5 {dimension_numbers = #tpu.dot_dimension_numbers<[1], [0], [0], [1], [0, 0, 1, 1], [], []>} : vector<16x128xf32>, vector<128x32xf32>, vector<16x32xf32> -> vector<16x32xf32>
    %c0_6 = arith.constant 0 : index
    %c0_7 = arith.constant 0 : index
    %13 = vector.load %arg4[%c0_6, %c0_7] : memref<16x32xf32, #tpu.memory_space<vmem>>, vector<16x32xf32>
    tpu.vector_store %arg4[%c0_6, %c0_7], %12 {strides = array<i32>} : memref<16x32xf32, #tpu.memory_space<vmem>>, vector<16x32xf32>,
    return
  }
  func.func @transform_0(%arg0: i32) -> (i32, i32) {
    %c0_i32 = arith.constant 0 : i32
    %c0_i32_0 = arith.constant 0 : i32
    return %arg0, %c0_i32 : i32, i32
  }
  func.func @transform_1(%arg0: i32) -> (i32, i32) {
    %c0_i32 = arith.constant 0 : i32
    %c0_i32_0 = arith.constant 0 : i32
    %c0_i32_1 = arith.constant 0 : i32
    return %c0_i32, %c0_i32_0 : i32, i32
  }
  func.func @transform_2(%arg0: i32) -> (i32, i32) {
    %c0_i32 = arith.constant 0 : i32
    %c0_i32_0 = arith.constant 0 : i32
    %c0_i32_1 = arith.constant 0 : i32
    return %c0_i32, %c0_i32_0 : i32, i32
  }
  func.func @transform_3(%arg0: i32) -> (i32, i32) {
    %c0_i32 = arith.constant 0 : i32
    %c0_i32_0 = arith.constant 0 : i32
    return %arg0, %c0_i32 : i32, i32
  }
}

</mosaic_0001>

<llo_original>
// kernel: tpu_custom_call.1
$region0: #{tpu_custom_call.1}
  #allocation0 [shape = 'u32[]', space=smem, size = 0x4, offset = 0x4, fixed_abs, tag = 'smem constant byte address 0x4 - core index']
  #allocation1 [shape = 'u32[144,128]{1,0:T(1,128)}', space=vmem, size = 0x12000, scoped, tag = 'internal scratch']
  %s0 = inlined_call_operand.vmem [shape: f32[16,32], index: 0, kind: input, shape index: {}]
  %s1 = inlined_call_operand.vmem [shape: f32[32,128], index: 1, kind: input, shape index: {}]
  %s2 = inlined_call_operand.vmem [shape: f32[128,32], index: 2, kind: input, shape index: {}]
  %s3 = inlined_call_operand.hbm [shape: f32[16,32], index: 3, kind: output, shape index: {}]
  %s4 = sld [smem:[#allocation0]]
  $region22: #{tpu_custom_call.1} parent=0
    _
  %s6 = ssub.s32 1, %s4
  %s7 = scalar_select 0, %s6, %s4
  $region1: #{tpu_custom_call.1} parent=0
    #allocation2 [shape = 'u8[8192]{0}', space=vmem, size = 0x2000, scoped, tag = 'output window, operand 0, single buffered']
    #allocation3 [shape = 's32[1]{0}', space=sflag, size = 0x4, scoped, tag = 'scoped memory for tpu_custom_call.1']
    %8 = vsyncpa [#allocation3], 0
    // Predicated region
    $region2: #{tpu_custom_call.1} parent=1 // pred_check
      _
    $region3: #{tpu_custom_call.1} parent=1 // pred_check_branch
      %10 = sbr.rel (0) target = $region5
    $region4: #{tpu_custom_call.1} parent=1 // pred_region
      _
    $region5: #{tpu_custom_call.1} parent=1 // pred_fallthru
      _
    // Predicated region
    $region6: #{tpu_custom_call.1} parent=1 // pred_check
      _
    $region7: #{tpu_custom_call.1} parent=1 // pred_check_branch
      %12 = sbr.rel (0) target = $region9
    $region8: #{tpu_custom_call.1} parent=1 // pred_region
      _
    $region9: #{tpu_custom_call.1} parent=1 // pred_fallthru
      _
    // Predicated region
    $region10: #{tpu_custom_call.1} parent=1 // pred_check
      _
    $region11: #{tpu_custom_call.1} parent=1 // pred_check_branch
      %14 = sbr.rel (0) target = $region13
    $region12: #{tpu_custom_call.1} parent=1 // pred_region
      _
    $region13: #{tpu_custom_call.1} parent=1 // pred_fallthru
      _
    %v15 = vld [vmem:[%s0] sm:$0xff]
    %v16 = vld [vmem:[%s0 + $0x8] sm:$0xff]
    %v17 = vld [vmem:[%s1] sm:$0xff]
    %v18 = vld [vmem:[%s1 + $0x8] sm:$0xff]
    %v19 = vld [vmem:[%s1 + $0x10] sm:$0xff]
    %v20 = vld [vmem:[%s1 + $0x18] sm:$0xff]
    %v21 = vld [vmem:[%s2] sm:$0xff]
    %v22 = vld [vmem:[%s2 + $0x8] sm:$0xff]
    %v23 = vld [vmem:[%s2 + $0x10] sm:$0xff]
    %v24 = vld [vmem:[%s2 + $0x18] sm:$0xff]
    %v25 = vld [vmem:[%s2 + $0x20] sm:$0xff]
    %v26 = vld [vmem:[%s2 + $0x28] sm:$0xff]
    %v27 = vld [vmem:[%s2 + $0x30] sm:$0xff]
    %v28 = vld [vmem:[%s2 + $0x38] sm:$0xff]
    %v29 = vld [vmem:[%s2 + $0x40] sm:$0xff]
    %v30 = vld [vmem:[%s2 + $0x48] sm:$0xff]
    %v31 = vld [vmem:[%s2 + $0x50] sm:$0xff]
    %v32 = vld [vmem:[%s2 + $0x58] sm:$0xff]
    %v33 = vld [vmem:[%s2 + $0x60] sm:$0xff]
    %v34 = vld [vmem:[%s2 + $0x68] sm:$0xff]
    %v35 = vld [vmem:[%s2 + $0x70] sm:$0xff]
    %v36 = vld [vmem:[%s2 + $0x78] sm:$0xff]
    %vm37 = vcmask 261120
    %v39 = vsel %vm37, %v15, 0
    %v42 = vsel %vm37, %v16, 0
    %44 = vmatprep.subr.mxu0 0.0
    %45 = vmatpush1.msra.mxu0 %v17
    %46 = vmatprep.subr.mxu0 0.0
    %47 = vmatpush1.msra.mxu0 %v18
    %48 = vmatprep.subr.mxu0 0.0
    %49 = vmatpush1.msra.mxu0 %v19
    %50 = vmatprep.subr.mxu0 0.0
    %51 = vmatpush1.msra.mxu0 %v20
    %52 = vmatprep.subr.mxu0 0.0
    %53 = vmatpush1.msra.mxu0 0.0
    %54 = vmatprep.subr.mxu0 0.0
    %55 = vmatpush1.msra.mxu0 0.0
    %56 = vmatprep.subr.mxu0 0.0
    %57 = vmatpush1.msra.mxu0 0.0
    %58 = vmatprep.subr.mxu0 0.0
    %59 = vmatpush1.msra.mxu0 0.0
    %60 = vmatprep.subr.mxu0 0.0
    %61 = vmatpush1.msra.mxu0 0.0
    %62 = vmatprep.subr.mxu0 0.0
    %63 = vmatpush1.msra.mxu0 0.0
    %64 = vmatprep.subr.mxu0 0.0
    %65 = vmatpush1.msra.mxu0 0.0
    %66 = vmatprep.subr.mxu0 0.0
    %67 = vmatpush1.msra.mxu0 0.0
    %68 = vmatprep.subr.mxu0 0.0
    %69 = vmatpush1.msra.mxu0 0.0
    %70 = vmatprep.subr.mxu0 0.0
    %71 = vmatpush1.msra.mxu0 0.0
    %72 = vmatprep.subr.mxu0 0.0
    %73 = vmatpush1.msra.mxu0 0.0
    %74 = vmatprep.subr.mxu0 0.0
    %75 = vmatpush1.msra.mxu0 0.0
    %76 = vmatprep.subr.mxu0 0.0
    %77 = vmatpush1.msra.mxu0 0.0
    %78 = vmatprep.subr.mxu0 0.0
    %79 = vmatpush1.msra.mxu0 0.0
    %80 = vmatprep.subr.mxu0 0.0
    %81 = vmatpush1.msra.mxu0 0.0
    %82 = vmatprep.subr.mxu0 0.0
    %83 = vmatpush1.msra.mxu0 0.0
    %84 = vmatprep.subr.mxu0 0.0
    %85 = vmatpush1.msra.mxu0 0.0
    %86 = vmatprep.subr.mxu0 0.0
    %87 = vmatpush1.msra.mxu0 0.0
    %88 = vmatprep.subr.mxu0 0.0
    %89 = vmatpush1.msra.mxu0 0.0
    %90 = vmatprep.subr.mxu0 0.0
    %91 = vmatpush1.msra.mxu0 0.0
    %92 = vmatprep.subr.mxu0 0.0
    %93 = vmatpush1.msra.mxu0 0.0
    %94 = vmatprep.subr.mxu0 0.0
    %95 = vmatpush1.msra.mxu0 0.0
    %96 = vmatprep.subr.mxu0 0.0
    %97 = vmatpush1.msra.mxu0 0.0
    %98 = vmatprep.subr.mxu0 0.0
    %99 = vmatpush1.msra.mxu0 0.0
    %100 = vmatprep.subr.mxu0 0.0
    %101 = vmatpush1.msra.mxu0 0.0
    %102 = vmatprep.subr.mxu0 0.0
    %103 = vmatpush1.msra.mxu0 0.0
    %104 = vmatprep.subr.mxu0 0.0
    %105 = vmatpush1.msra.mxu0 0.0
    %106 = vmatprep.subr.mxu0 0.0
    %107 = vmatpush1.msra.mxu0 0.0
    %108 = vmatprep.mubr.f32.mxu0 0.0
    %109 = vmatmul.mubr.f32.gmra.mrb[0].mxu0 %v39
    %v110 = vpop.f32.mrb[0].mxu0
    %v111 = vadd.f32 0.0, %v110
    %v112 = vpop.f32.mrb[0].mxu0
    %113 = vmatprep.mubr.f32.mxu0 0.0
    %114 = vmatmul.mubr.f32.gmra.mrb[0].mxu0 %v42
    %v115 = vpop.f32.mrb[0].mxu0
    %v116 = vadd.f32 0.0, %v115
    %v117 = vpop.f32.mrb[0].mxu0
    %118 = vdwg.mxu0
    %119 = vmax.index.xlane.f32.xlu0 %v111
    %v120 = vpop.xlane.xlu0 %119
    %121 = vmax.index.xlane.f32.xlu0 %v116
    %v122 = vpop.xlane.xlu0 %121
    %v123 = vlaneseq
    %v124 = vand.u32 %v123, 127
    %vm125 = vcmp.eq.s32.totalorder %v124, %v120
    %vm126 = vcmp.eq.s32.totalorder %v124, %v122
    %v127 = vsel %vm125, 1, 0
    %v128 = vsel %vm126, 1, 0
    %v129 = vcvt.s32.f32 %v127
    %v130 = vcvt.s32.f32 %v128
    %131 = vmatprep.subr.mxu0 0.0
    %132 = vmatpush1.msra.mxu0 %v21
    %133 = vmatprep.subr.mxu0 0.0
    %134 = vmatpush1.msra.mxu0 %v22
    %135 = vmatprep.subr.mxu0 0.0
    %136 = vmatpush1.msra.mxu0 %v23
    %137 = vmatprep.subr.mxu0 0.0
    %138 = vmatpush1.msra.mxu0 %v24
    %139 = vmatprep.subr.mxu0 0.0
    %140 = vmatpush1.msra.mxu0 %v25
    %141 = vmatprep.subr.mxu0 0.0
    %142 = vmatpush1.msra.mxu0 %v26
    %143 = vmatprep.subr.mxu0 0.0
    %144 = vmatpush1.msra.mxu0 %v27
    %145 = vmatprep.subr.mxu0 0.0
    %146 = vmatpush1.msra.mxu0 %v28
    %147 = vmatprep.subr.mxu0 0.0
    %148 = vmatpush1.msra.mxu0 %v29
    %149 = vmatprep.subr.mxu0 0.0
    %150 = vmatpush1.msra.mxu0 %v30
    %151 = vmatprep.subr.mxu0 0.0
    %152 = vmatpush1.msra.mxu0 %v31
    %153 = vmatprep.subr.mxu0 0.0
    %154 = vmatpush1.msra.mxu0 %v32
    %155 = vmatprep.subr.mxu0 0.0
    %156 = vmatpush1.msra.mxu0 %v33
    %157 = vmatprep.subr.mxu0 0.0
    %158 = vmatpush1.msra.mxu0 %v34
    %159 = vmatprep.subr.mxu0 0.0
    %160 = vmatpush1.msra.mxu0 %v35
    %161 = vmatprep.subr.mxu0 0.0
    %162 = vmatpush1.msra.mxu0 %v36
    %163 = vmatprep.subr.mxu0 0.0
    %164 = vmatpush1.msra.mxu0 0.0
    %165 = vmatprep.subr.mxu0 0.0
    %166 = vmatpush1.msra.mxu0 0.0
    %167 = vmatprep.subr.mxu0 0.0
    %168 = vmatpush1.msra.mxu0 0.0
    %169 = vmatprep.subr.mxu0 0.0
    %170 = vmatpush1.msra.mxu0 0.0
    %171 = vmatprep.subr.mxu0 0.0
    %172 = vmatpush1.msra.mxu0 0.0
    %173 = vmatprep.subr.mxu0 0.0
    %174 = vmatpush1.msra.mxu0 0.0
    %175 = vmatprep.subr.mxu0 0.0
    %176 = vmatpush1.msra.mxu0 0.0
    %177 = vmatprep.subr.mxu0 0.0
    %178 = vmatpush1.msra.mxu0 0.0
    %179 = vmatprep.subr.mxu0 0.0
    %180 = vmatpush1.msra.mxu0 0.0
    %181 = vmatprep.subr.mxu0 0.0
    %182 = vmatpush1.msra.mxu0 0.0
    %183 = vmatprep.subr.mxu0 0.0
    %184 = vmatpush1.msra.mxu0 0.0
    %185 = vmatprep.subr.mxu0 0.0
    %186 = vmatpush1.msra.mxu0 0.0
    %187 = vmatprep.subr.mxu0 0.0
    %188 = vmatpush1.msra.mxu0 0.0
    %189 = vmatprep.subr.mxu0 0.0
    %190 = vmatpush1.msra.mxu0 0.0
    %191 = vmatprep.subr.mxu0 0.0
    %192 = vmatpush1.msra.mxu0 0.0
    %193 = vmatprep.subr.mxu0 0.0
    %194 = vmatpush1.msra.mxu0 0.0
    %195 = vmatprep.mubr.f32.mxu0 0.0
    %196 = vmatmul.mubr.f32.gmra.mrb[0].mxu0 %v129
    %v197 = vpop.f32.mrb[0].mxu0
    %v198 = vadd.f32 0.0, %v197
    %v199 = vpop.f32.mrb[0].mxu0
    %200 = vmatprep.mubr.f32.mxu0 0.0
    %201 = vmatmul.mubr.f32.gmra.mrb[0].mxu0 %v130
    %v202 = vpop.f32.mrb[0].mxu0
    %v203 = vadd.f32 0.0, %v202
    %v204 = vpop.f32.mrb[0].mxu0
    %205 = vdwg.mxu0
    %206 = vst.msk [vmem:[#allocation2] sm:$0xff] %vm37, %v198
    %207 = vst.msk [vmem:[#allocation2 + $0x8] sm:$0xff] %vm37, %v203
    // Predicated region
    $region14: #{tpu_custom_call.1} parent=1 // pred_check
      _
    $region15: #{tpu_custom_call.1} parent=1 // pred_check_branch
      %209 = sbr.rel (0) target = $region17
    $region16: #{tpu_custom_call.1} parent=1 // pred_region
      %s211 = ssub.s32 256, 256
      %212 = vsyncadd [#allocation3], %s211
      %s213 = sshll.u32 [#allocation2], 4
      %s214 = int_to_ptr.vmem [resolvable:$true] %s213
      %219 = dma.vmem_to_hbm [thread:$0]  %s214, 256, %s3, [#allocation3], 128, 128, 8
    $region17: #{tpu_custom_call.1} parent=1 // pred_fallthru
      _
    // Predicated region
    $region18: #{tpu_custom_call.1} parent=1 // pred_check
      _
    $region19: #{tpu_custom_call.1} parent=1 // pred_check_branch
      %221 = sbr.rel (0) target = $region21
    $region20: #{tpu_custom_call.1} parent=1 // pred_region
      %222 = dma.done [#allocation3], 256
    $region21: #{tpu_custom_call.1} parent=1 // pred_fallthru
      _
    %223 = vsyncpa [#allocation3], 1

</llo_original>
